<compile_context>
chip_gen: v7x
topology: tpu7x:2x2x1
jax: 0.10.0
libtpu: 0.0.40
codegen_flags: <defaults>
</compile_context>

<pallas_src>
import jax
import jax.numpy as jnp
from jax.experimental import pallas as pl
from jax.experimental.pallas import tpu as pltpu


# ----------------------------- kernel ---------------------------------------

def shallow_ae_kernel(x_ref, w1_ref, b1_ref, w23_ref, b23_ref, w4_ref, b4_ref,
                      o_ref):
    """One batch tile of: Linear(D,128)+ReLU -> [Linear(128,64);Linear(64,128)]
    folded into one 128x128 matmul -> ReLU -> Linear(128,D)."""
    x = x_ref[...]

    # encoder L1 + ReLU (f32 MXU accumulation, f32 bias/activation math)
    h = jnp.dot(x, w1_ref[...], preferred_element_type=jnp.float32) + b1_ref[...]
    h = jnp.maximum(h, 0.0).astype(w23_ref.dtype)

    # folded encoder L2 + decoder L1 (single 128x128 matmul) + ReLU
    g = jnp.dot(h, w23_ref[...], preferred_element_type=jnp.float32) + b23_ref[...]
    g = jnp.maximum(g, 0.0).astype(w4_ref.dtype)

    # decoder L2
    y = jnp.dot(g, w4_ref[...], preferred_element_type=jnp.float32) + b4_ref[...]
    o_ref[...] = y.astype(o_ref.dtype)


# ----------------------------- parameter prep (one-time) ---------------------

def _round_up(n, m):
    return ((n + m - 1) // m) * m


def _vmem_capacity_bytes():
    # Generation-aware physical VMEM: 128 MiB on v5e/v6e, 64 MiB on v7x.
    # Host-side probe only; falling back never masks a kernel error.
    try:
        return int(pltpu.get_tpu_info().vmem_capacity_bytes)
    except Exception:                      # noqa: BLE001  (v7x-safe default)
        return 64 << 20


def prepare_params(params, *, weight_dtype=jnp.float32):
    """One-time parameter preprocessing, hoisted out of the per-step forward.

    Folds the activation-free bottleneck pair Linear(128,64)->Linear(64,128)
    into a single 128x128 matmul (exact in infinite precision), zero-pads the
    D-sized dims to a 128-lane multiple so the kernel output is lane-dense,
    and casts the MXU operands to `weight_dtype` (biases stay f32)."""
    D = params["w1"].shape[0]
    Dp = _round_up(D, 128)

    w2f = params["w2"].astype(jnp.float32)
    w3f = params["w3"].astype(jnp.float32)
    w23 = jnp.dot(w2f, w3f)                                              # (128,128)
    b23 = jnp.dot(params["b2"].astype(jnp.float32), w3f) + params["b3"]  # (1,128)

    w1, b1 = params["w1"], params["b1"]
    w4, b4 = params["w4"], params["b4"]
    if Dp != D:
        w1 = jnp.pad(w1, ((0, Dp - D), (0, 0)))
        w4 = jnp.pad(w4, ((0, 0), (0, Dp - D)))
        b4 = jnp.pad(b4, ((0, 0), (0, Dp - D)))

    return dict(
        D=D, Dp=Dp, weight_dtype=jnp.dtype(weight_dtype),
        w1=jnp.asarray(w1, weight_dtype),
        w23=jnp.asarray(w23, weight_dtype),
        w4=jnp.asarray(w4, weight_dtype),
        b1=jnp.asarray(b1, jnp.float32),
        b23=jnp.asarray(b23, jnp.float32),
        b4=jnp.asarray(b4, jnp.float32),
    )


# ----------------------------- forward ---------------------------------------

def _choose_tb(B, sub, Dp, in_itemsize, out_itemsize, io_budget_bytes):
    """Largest sublane-aligned batch tile such that
       (a) the grid has >= 4 steps whenever B allows (>= 2 per TensorCore after
           the 'parallel' batch axis is sharded across v7x's two TCs), and
       (b) the double-buffered x/out tiles fit the VMEM I/O budget."""
    row_bytes = 2 * Dp * (in_itemsize + out_itemsize)   # 2 bufs x (x + out) per row
    cap_steps = max(B // 4, sub)
    cap_vmem = max(io_budget_bytes // max(row_bytes, 1), sub)
    tb = min(2048, cap_steps, cap_vmem)
    tb = max(sub, (tb // sub) * sub)
    return min(tb, _round_up(B, sub))


def shallow_ae_forward(x, prepared, *, tb=None, out_dtype=None):
    """x: [B, D] (f32 or bf16). `prepared` comes from prepare_params()."""
    B, D = x.shape
    assert D == prepared["D"], (D, prepared["D"])
    Dp = prepared["Dp"]
    out_dtype = jnp.dtype(x.dtype if out_dtype is None else out_dtype)

    in_is = jnp.dtype(x.dtype).itemsize
    out_is = out_dtype.itemsize
    w_is = prepared["weight_dtype"].itemsize
    sub = 8 * (4 // min(in_is, out_is))      # sublane packing of narrowest I/O dtype

    # grid-resident weight slabs (default double-buffered; tiny next to x/out tiles,
    # so no pl.Buffered(1) special-casing)
    w_bytes = 2 * ((Dp * 128 + 128 * 128 + 128 * Dp) * w_is + (2 * 128 + Dp) * 4)

    cap = _vmem_capacity_bytes()
    # 48 MiB budget on v7x (64 MiB phys), ~109 MiB on v5e/v6e (128 MiB phys)
    budget = max(min(cap - (16 << 20), int(cap * 0.85)), 24 << 20)
    io_budget = max(budget - w_bytes - (2 << 20), 4 << 20)

    if tb is None:
        tb = _choose_tb(B, sub, Dp, in_is, out_is, io_budget)
    else:
        tb = max(sub, _round_up(tb, sub))
    Bp = _round_up(B, tb)

    # scoped-VMEM request = actual need + margin, never the full chip
    need = 2 * tb * Dp * (in_is + out_is) + w_bytes + (2 << 20)
    vmem_limit = int(min(max(need, 32 << 20), budget))

    # TODO(synk): add D-tiling (k-accumulation for x@w1 + N-tiling of w4/out) for
    # feature dims so large that even a single sublane-tall batch tile overflows
    # the per-generation VMEM budget; for now large D only shrinks tb.

    xp = x if (Bp == B and Dp == D) else jnp.pad(x, ((0, Bp - B), (0, Dp - D)))

    def wspec(arr):
        return pl.BlockSpec(arr.shape, lambda i: (0, 0))     # grid-resident weights

    out = pl.pallas_call(
        shallow_ae_kernel,
        out_shape=jax.ShapeDtypeStruct((Bp, Dp), out_dtype),
        grid_spec=pltpu.PrefetchScalarGridSpec(
            num_scalar_prefetch=0,
            grid=(Bp // tb,),
            in_specs=[
                pl.BlockSpec((tb, Dp), lambda i: (i, 0)),     # x batch tile
                wspec(prepared["w1"]), wspec(prepared["b1"]),
                wspec(prepared["w23"]), wspec(prepared["b23"]),
                wspec(prepared["w4"]), wspec(prepared["b4"]),
            ],
            out_specs=pl.BlockSpec((tb, Dp), lambda i: (i, 0)),
        ),
        compiler_params=pltpu.CompilerParams(
            # TODO(synk): on v7x, if this build does not shard "parallel" across
            # both TensorCores, switch this axis to pltpu.CORE_PARALLEL.
            dimension_semantics=("parallel",),
            vmem_limit_bytes=vmem_limit,
        ),
    )(xp, prepared["w1"], prepared["b1"], prepared["w23"], prepared["b23"],
      prepared["w4"], prepared["b4"])

    if (Bp, Dp) != (B, D):
        out = out[:B, :D]
    return out


# ----------------------------- helpers / reference ---------------------------

def init_params(key, input_dim):
    """Deterministic synthetic init matching nn.Linear shapes (stored as [in,out])."""
    ks = jax.random.split(key, 8)

    def linear(kw, kb, fan_in, fan_out):
        bound = 1.0 / jnp.sqrt(fan_in)
        w = jax.random.uniform(kw, (fan_in, fan_out), jnp.float32, -bound, bound)
        b = jax.random.uniform(kb, (1, fan_out), jnp.float32, -bound, bound)
        return w, b

    w1, b1 = linear(ks[0], ks[1], input_dim, 128)
    w2, b2 = linear(ks[2], ks[3], 128, 64)
    w3, b3 = linear(ks[4], ks[5], 64, 128)
    w4, b4 = linear(ks[6], ks[7], 128, input_dim)
    return dict(w1=w1, b1=b1, w2=w2, b2=b2, w3=w3, b3=b3, w4=w4, b4=b4)


def reference_forward(x, p):
    h = jnp.maximum(x @ p["w1"] + p["b1"], 0.0)
    z = h @ p["w2"] + p["b2"]
    g = jnp.maximum(z @ p["w3"] + p["b3"], 0.0)
    return g @ p["w4"] + p["b4"]


# ----------------------------- main ------------------------------------------

if __name__ == "__main__":
    key = jax.random.PRNGKey(0)
    k_x, k_p = jax.random.split(key)

    batch, input_dim = 256, 256          # gives grid=(4,) with the auto tile choice
    x = jax.random.normal(k_x, (batch, input_dim), jnp.float32)
    params = init_params(k_p, input_dim)
    ref = reference_forward(x, params)

    # f32 path (prep hoisted & cached; the W23 fold is algebraically exact)
    prep_f32 = prepare_params(params, weight_dtype=jnp.float32)
    out = jax.block_until_ready(shallow_ae_forward(x, prep_f32))
    assert out.shape == (batch, input_dim) and out.dtype == x.dtype
    err = float(jnp.max(jnp.abs(out - ref)))
    assert err < 5e-4, err

    # bf16 I/O path (HBM-bandwidth lever on v6e/v7x); relaxed tolerance,
    # not bit-exact vs. running the bottleneck layers separately in bf16.
    prep_bf16 = prepare_params(params, weight_dtype=jnp.bfloat16)
    out_bf = jax.block_until_ready(
        shallow_ae_forward(x.astype(jnp.bfloat16), prep_bf16))
    assert out_bf.shape == (batch, input_dim) and out_bf.dtype == jnp.bfloat16
    rel = float(jnp.linalg.norm(out_bf.astype(jnp.float32) - ref)
                / jnp.linalg.norm(ref))
    assert rel < 0.05, rel

    # f32 input with bf16 writeback (cuts the output half of the HBM traffic ~2x)
    out_mix = jax.block_until_ready(
        shallow_ae_forward(x, prep_f32, out_dtype=jnp.bfloat16))
    assert out_mix.shape == (batch, input_dim) and out_mix.dtype == jnp.bfloat16
    rel_mix = float(jnp.linalg.norm(out_mix.astype(jnp.float32) - ref)
                    / jnp.linalg.norm(ref))
    assert rel_mix < 0.02, rel_mix

    print("KERNEL_OK")
</pallas_src>

<mosaic_0001>
module attributes {stable_mosaic.version = 11 : i64} {
  func.func @shallow_ae_kernel(%arg0: i32, %arg1: memref<64x256xf32, #tpu.memory_space<vmem>>, %arg2: memref<256x128xf32, #tpu.memory_space<vmem>>, %arg3: memref<1x128xf32, #tpu.memory_space<vmem>>, %arg4: memref<128x128xf32, #tpu.memory_space<vmem>>, %arg5: memref<1x128xf32, #tpu.memory_space<vmem>>, %arg6: memref<128x256xf32, #tpu.memory_space<vmem>>, %arg7: memref<1x256xf32, #tpu.memory_space<vmem>>, %arg8: memref<64x256xf32, #tpu.memory_space<vmem>>) attributes {dimension_semantics = [#tpu.dimension_semantics<parallel>], iteration_bounds = array<i64: 4>, scalar_prefetch = 0 : i64, scratch_operands = 0 : i64, tpu.core_type = #tpu.core_type<tc>, window_params = [{transform_indices = @transform_0, window_bounds = array<i64: 64, 256>}, {pipeline_mode = #tpu.pipeline_mode<synchronous>, transform_indices = @transform_1, window_bounds = array<i64: 256, 128>}, {pipeline_mode = #tpu.pipeline_mode<synchronous>, transform_indices = @transform_2, window_bounds = array<i64: 1, 128>}, {pipeline_mode = #tpu.pipeline_mode<synchronous>, transform_indices = @transform_3, window_bounds = array<i64: 128, 128>}, {pipeline_mode = #tpu.pipeline_mode<synchronous>, transform_indices = @transform_4, window_bounds = array<i64: 1, 128>}, {pipeline_mode = #tpu.pipeline_mode<synchronous>, transform_indices = @transform_5, window_bounds = array<i64: 128, 256>}, {pipeline_mode = #tpu.pipeline_mode<synchronous>, transform_indices = @transform_6, window_bounds = array<i64: 1, 256>}, {transform_indices = @transform_7, window_bounds = array<i64: 64, 256>}]} {
    %c0 = arith.constant 0 : index
    %c0_0 = arith.constant 0 : index
    %0 = vector.load %arg1[%c0, %c0_0] : memref<64x256xf32, #tpu.memory_space<vmem>>, vector<64x256xf32>
    %c0_1 = arith.constant 0 : index
    %c0_2 = arith.constant 0 : index
    %1 = vector.load %arg2[%c0_1, %c0_2] : memref<256x128xf32, #tpu.memory_space<vmem>>, vector<256x128xf32>
    %cst = arith.constant dense<0.000000e+00> : vector<64x128xf32>
    %2 = tpu.matmul %0, %1, %cst {dimension_numbers = #tpu.dot_dimension_numbers<[1], [0], [0], [1], [0, 0, 1, 1], [], []>} : vector<64x256xf32>, vector<256x128xf32>, vector<64x128xf32> -> vector<64x128xf32>
    %c0_3 = arith.constant 0 : index
    %c0_4 = arith.constant 0 : index
    %3 = vector.load %arg3[%c0_3, %c0_4] : memref<1x128xf32, #tpu.memory_space<vmem>>, vector<1x128xf32>
    %4 = vector.broadcast %3 : vector<1x128xf32> to vector<64x128xf32>
    %5 = arith.addf %2, %4 : vector<64x128xf32>
    %cst_5 = arith.constant 0.000000e+00 : f32
    %6 = vector.broadcast %cst_5 : f32 to vector<64x128xf32>
    %7 = arith.maximumf %5, %6 : vector<64x128xf32>
    %c0_6 = arith.constant 0 : index
    %c0_7 = arith.constant 0 : index
    %8 = vector.load %arg4[%c0_6, %c0_7] : memref<128x128xf32, #tpu.memory_space<vmem>>, vector<128x128xf32>
    %cst_8 = arith.constant dense<0.000000e+00> : vector<64x128xf32>
    %9 = tpu.matmul %7, %8, %cst_8 {dimension_numbers = #tpu.dot_dimension_numbers<[1], [0], [0], [1], [0, 0, 1, 1], [], []>} : vector<64x128xf32>, vector<128x128xf32>, vector<64x128xf32> -> vector<64x128xf32>
    %c0_9 = arith.constant 0 : index
    %c0_10 = arith.constant 0 : index
    %10 = vector.load %arg5[%c0_9, %c0_10] : memref<1x128xf32, #tpu.memory_space<vmem>>, vector<1x128xf32>
    %11 = vector.broadcast %10 : vector<1x128xf32> to vector<64x128xf32>
    %12 = arith.addf %9, %11 : vector<64x128xf32>
    %cst_11 = arith.constant 0.000000e+00 : f32
    %13 = vector.broadcast %cst_11 : f32 to vector<64x128xf32>
    %14 = arith.maximumf %12, %13 : vector<64x128xf32>
    %c0_12 = arith.constant 0 : index
    %c0_13 = arith.constant 0 : index
    %15 = vector.load %arg6[%c0_12, %c0_13] : memref<128x256xf32, #tpu.memory_space<vmem>>, vector<128x256xf32>
    %cst_14 = arith.constant dense<0.000000e+00> : vector<64x256xf32>
    %16 = tpu.matmul %14, %15, %cst_14 {dimension_numbers = #tpu.dot_dimension_numbers<[1], [0], [0], [1], [0, 0, 1, 1], [], []>} : vector<64x128xf32>, vector<128x256xf32>, vector<64x256xf32> -> vector<64x256xf32>
    %c0_15 = arith.constant 0 : index
    %c0_16 = arith.constant 0 : index
    %17 = vector.load %arg7[%c0_15, %c0_16] : memref<1x256xf32, #tpu.memory_space<vmem>>, vector<1x256xf32>
    %18 = vector.broadcast %17 : vector<1x256xf32> to vector<64x256xf32>
    %19 = arith.addf %16, %18 : vector<64x256xf32>
    %c0_17 = arith.constant 0 : index
    %c0_18 = arith.constant 0 : index
    %20 = vector.load %arg8[%c0_17, %c0_18] : memref<64x256xf32, #tpu.memory_space<vmem>>, vector<64x256xf32>
    tpu.vector_store %arg8[%c0_17, %c0_18], %19 {strides = array<i32>} : memref<64x256xf32, #tpu.memory_space<vmem>>, vector<64x256xf32>,
    return
  }
  func.func @transform_0(%arg0: i32) -> (i32, i32) {
    %c0_i32 = arith.constant 0 : i32
    %c0_i32_0 = arith.constant 0 : i32
    return %arg0, %c0_i32 : i32, i32
  }
  func.func @transform_1(%arg0: i32) -> (i32, i32) {
    %c0_i32 = arith.constant 0 : i32
    %c0_i32_0 = arith.constant 0 : i32
    %c0_i32_1 = arith.constant 0 : i32
    return %c0_i32, %c0_i32_0 : i32, i32
  }
  func.func @transform_2(%arg0: i32) -> (i32, i32) {
    %c0_i32 = arith.constant 0 : i32
    %c0_i32_0 = arith.constant 0 : i32
    %c0_i32_1 = arith.constant 0 : i32
    return %c0_i32, %c0_i32_0 : i32, i32
  }
  func.func @transform_3(%arg0: i32) -> (i32, i32) {
    %c0_i32 = arith.constant 0 : i32
    %c0_i32_0 = arith.constant 0 : i32
    %c0_i32_1 = arith.constant 0 : i32
    return %c0_i32, %c0_i32_0 : i32, i32
  }
  func.func @transform_4(%arg0: i32) -> (i32, i32) {
    %c0_i32 = arith.constant 0 : i32
    %c0_i32_0 = arith.constant 0 : i32
    %c0_i32_1 = arith.constant 0 : i32
    return %c0_i32, %c0_i32_0 : i32, i32
  }
  func.func @transform_5(%arg0: i32) -> (i32, i32) {
    %c0_i32 = arith.constant 0 : i32
    %c0_i32_0 = arith.constant 0 : i32
    %c0_i32_1 = arith.constant 0 : i32
    return %c0_i32, %c0_i32_0 : i32, i32
  }
  func.func @transform_6(%arg0: i32) -> (i32, i32) {
    %c0_i32 = arith.constant 0 : i32
    %c0_i32_0 = arith.constant 0 : i32
    %c0_i32_1 = arith.constant 0 : i32
    return %c0_i32, %c0_i32_0 : i32, i32
  }
  func.func @transform_7(%arg0: i32) -> (i32, i32) {
    %c0_i32 = arith.constant 0 : i32
    %c0_i32_0 = arith.constant 0 : i32
    return %arg0, %c0_i32 : i32, i32
  }
}

</mosaic_0001>

<llo_original>
// kernel: tpu_custom_call.1
$region0: #{tpu_custom_call.1}
  #allocation0 [shape = 'u32[]', space=smem, size = 0x4, offset = 0x4, fixed_abs, tag = 'smem constant byte address 0x4 - core index']
  #allocation1 [shape = 'u32[144,128]{1,0:T(1,128)}', space=vmem, size = 0x12000, scoped, tag = 'internal scratch']
  %s0 = inlined_call_operand.hbm [shape: f32[256,256], index: 0, kind: input, shape index: {}]
  %s1 = inlined_call_operand.hbm [shape: f32[256,128], index: 1, kind: input, shape index: {}]
  %s2 = inlined_call_operand.vmem [shape: f32[1,128], index: 2, kind: input, shape index: {}]
  %s3 = inlined_call_operand.hbm [shape: f32[128,128], index: 3, kind: input, shape index: {}]
  %s4 = inlined_call_operand.vmem [shape: f32[1,128], index: 4, kind: input, shape index: {}]
  %s5 = inlined_call_operand.hbm [shape: f32[128,256], index: 5, kind: input, shape index: {}]
  %s6 = inlined_call_operand.vmem [shape: f32[1,256], index: 6, kind: input, shape index: {}]
  %s7 = inlined_call_operand.hbm [shape: f32[256,256], index: 7, kind: output, shape index: {}]
  %s8 = sld [smem:[#allocation0]]
  $region77: #{tpu_custom_call.1} parent=0
    _
  %s10 = ssub.s32 1, %s8
  %s11 = scalar_select 0, %s10, %s8
  $region1: #{tpu_custom_call.1} parent=0
    #allocation2 [shape = 'u8[131072]{0}', space=vmem, size = 0x20000, scoped, tag = 'input window, operand 0']
    #allocation3 [shape = 's32[2]{0}', space=sflag, size = 0x8, scoped, tag = 'scoped memory for tpu_custom_call.1']
    #allocation4 [shape = 's32[2]{0}', space=sflag, size = 0x8, scoped, tag = 'scoped memory for tpu_custom_call.1']
    #allocation5 [shape = 'u8[131072]{0}', space=vmem, size = 0x20000, scoped, tag = 'input window, operand 1, single buffered']
    #allocation6 [shape = 's32[1]{0}', space=sflag, size = 0x4, scoped, tag = 'scoped memory for tpu_custom_call.1']
    #allocation7 [shape = 'u8[65536]{0}', space=vmem, size = 0x10000, scoped, tag = 'input window, operand 3, single buffered']
    #allocation8 [shape = 'u8[131072]{0}', space=vmem, size = 0x20000, scoped, tag = 'input window, operand 5, single buffered']
    #allocation9 [shape = 's32[1]{0}', space=sflag, size = 0x4, scoped, tag = 'scoped memory for tpu_custom_call.1']
    #allocation10 [shape = 'u8[131072]{0}', space=vmem, size = 0x20000, scoped, tag = 'output window, operand 0']
    %12 = vsyncpa [#allocation3], 0
    %s13 = scalar_lea.sflag [#allocation3], 1
    %14 = vsyncpa %s13, 0
    %15 = vsyncpa [#allocation6], 0
    %16 = vsyncpa [#allocation9], 0
    %17 = vsyncpa [#allocation4], 0
    %s18 = scalar_lea.sflag [#allocation4], 1
    %19 = vsyncpa %s18, 0
    loop: start=0, step=1, limit=6
    $region2: #{tpu_custom_call.1} parent=1 // loop_pre_header
      _
    $region3: #{tpu_custom_call.1} parent=1 // loop_header
      %s21 = sphi 0, %s25
      %p22 = scmp.ge.s32.totalorder %s21, 6
      %s31 = sphi 0, %s33
      %s34 = sphi 0, %s31
      %s35 = sphi 0, %s34
      %s51 = sphi 0, %s35
      %s55 = sphi 0, %s55
      %s57 = sphi 0, %s55
      %s58 = sphi 0, %s57
      %s72 = sphi 0, %s58
      %s76 = sphi 0, %s76
      %s78 = sphi 0, %s76
      %s79 = sphi 0, %s78
      %s93 = sphi 0, %s79
      %s97 = sphi 0, %s97
      %s99 = sphi 0, %s97
      %s100 = sphi 0, %s99
      %s114 = sphi 0, %s100
      %s118 = sphi 0, %s118
      %s120 = sphi 0, %s118
      %s121 = sphi 0, %s120
      %s135 = sphi 0, %s121
      %s139 = sphi 0, %s139
      %s141 = sphi 0, %s139
      %s142 = sphi 0, %s141
      %s156 = sphi 0, %s142
      %s160 = sphi 0, %s160
      %s162 = sphi 0, %s160
      %s163 = sphi 0, %s162
      %s177 = sphi 0, %s163
      %s183 = sphi 0, %s185
      %s186 = sphi 0, %s183
      %s187 = sphi 0, %s186
      %s203 = sphi 0, %s187
    $region4: #{tpu_custom_call.1} parent=1 // loop_header_branch
      %24 = sbr.rel (%p22) target = $region8
    $region5: #{tpu_custom_call.1} parent=1 // loop_body
      %s26 = ssub.s32 %s21, 1
      %s27 = ssub.s32 %s21, 2
      %s28 = sadd.s32 %s21, 1
      %s29 = ssub.s32 %s21, %s28
      %p30 = scmp.eq.s32.totalorder %s29, 0
      %s32 = sadd.s32 %s31, 1
      %s33 = scalar_select %p30, %s31, %s32
      %p36 = pneg %p30
      %p37 = scmp.eq.s32.totalorder %s21, 3
      %p38 = por %p36, %p37
      %p39 = scmp.ne.s32.totalorder %s31, %s34
      %p40 = scmp.eq.s32.totalorder %s21, 0
      %p41 = por %p39, %p40
      %p42 = scmp.ne.s32.totalorder %s31, %s34
      %p43 = scmp.eq.s32.totalorder %s26, 3
      %p44 = por %p42, %p43
      %p45 = scmp.ne.s32.totalorder %s34, %s35
      %p46 = scmp.eq.s32.totalorder %s26, 0
      %p47 = por %p45, %p46
      %p48 = scmp.ne.s32.totalorder %s34, %s35
      %p49 = scmp.eq.s32.totalorder %s27, 3
      %p50 = por %p48, %p49
      %p52 = scmp.ne.s32.totalorder %s35, %s51
      %p53 = scmp.eq.s32.totalorder %s27, 0
      %p54 = por %p52, %p53
      %s56 = sadd.s32 %s55, 1
      %p59 = scmp.eq.s32.totalorder %s21, 3
      %p60 = scmp.ne.s32.totalorder %s55, %s57
      %p61 = scmp.eq.s32.totalorder %s21, 0
      %p62 = por %p60, %p61
      %p63 = scmp.ne.s32.totalorder %s55, %s57
      %p64 = scmp.eq.s32.totalorder %s26, 3
      %p65 = por %p63, %p64
      %p66 = scmp.ne.s32.totalorder %s57, %s58
      %p67 = scmp.eq.s32.totalorder %s26, 0
      %p68 = por %p66, %p67
      %p69 = scmp.ne.s32.totalorder %s57, %s58
      %p70 = scmp.eq.s32.totalorder %s27, 3
      %p71 = por %p69, %p70
      %p73 = scmp.ne.s32.totalorder %s58, %s72
      %p74 = scmp.eq.s32.totalorder %s27, 0
      %p75 = por %p73, %p74
      %s77 = sadd.s32 %s76, 1
      %p80 = scmp.eq.s32.totalorder %s21, 3
      %p81 = scmp.ne.s32.totalorder %s76, %s78
      %p82 = scmp.eq.s32.totalorder %s21, 0
      %p83 = por %p81, %p82
      %p84 = scmp.ne.s32.totalorder %s76, %s78
      %p85 = scmp.eq.s32.totalorder %s26, 3
      %p86 = por %p84, %p85
      %p87 = scmp.ne.s32.totalorder %s78, %s79
      %p88 = scmp.eq.s32.totalorder %s26, 0
      %p89 = por %p87, %p88
      %p90 = scmp.ne.s32.totalorder %s78, %s79
      %p91 = scmp.eq.s32.totalorder %s27, 3
      %p92 = por %p90, %p91
      %p94 = scmp.ne.s32.totalorder %s79, %s93
      %p95 = scmp.eq.s32.totalorder %s27, 0
      %p96 = por %p94, %p95
      %s98 = sadd.s32 %s97, 1
      %p101 = scmp.eq.s32.totalorder %s21, 3
      %p102 = scmp.ne.s32.totalorder %s97, %s99
      %p103 = scmp.eq.s32.totalorder %s21, 0
      %p104 = por %p102, %p103
      %p105 = scmp.ne.s32.totalorder %s97, %s99
      %p106 = scmp.eq.s32.totalorder %s26, 3
      %p107 = por %p105, %p106
      %p108 = scmp.ne.s32.totalorder %s99, %s100
      %p109 = scmp.eq.s32.totalorder %s26, 0
      %p110 = por %p108, %p109
      %p111 = scmp.ne.s32.totalorder %s99, %s100
      %p112 = scmp.eq.s32.totalorder %s27, 3
      %p113 = por %p111, %p112
      %p115 = scmp.ne.s32.totalorder %s100, %s114
      %p116 = scmp.eq.s32.totalorder %s27, 0
      %p117 = por %p115, %p116
      %s119 = sadd.s32 %s118, 1
      %p122 = scmp.eq.s32.totalorder %s21, 3
      %p123 = scmp.ne.s32.totalorder %s118, %s120
      %p124 = scmp.eq.s32.totalorder %s21, 0
      %p125 = por %p123, %p124
      %p126 = scmp.ne.s32.totalorder %s118, %s120
      %p127 = scmp.eq.s32.totalorder %s26, 3
      %p128 = por %p126, %p127
      %p129 = scmp.ne.s32.totalorder %s120, %s121
      %p130 = scmp.eq.s32.totalorder %s26, 0
      %p131 = por %p129, %p130
      %p132 = scmp.ne.s32.totalorder %s120, %s121
      %p133 = scmp.eq.s32.totalorder %s27, 3
      %p134 = por %p132, %p133
      %p136 = scmp.ne.s32.totalorder %s121, %s135
      %p137 = scmp.eq.s32.totalorder %s27, 0
      %p138 = por %p136, %p137
      %s140 = sadd.s32 %s139, 1
      %p143 = scmp.eq.s32.totalorder %s21, 3
      %p144 = scmp.ne.s32.totalorder %s139, %s141
      %p145 = scmp.eq.s32.totalorder %s21, 0
      %p146 = por %p144, %p145
      %p147 = scmp.ne.s32.totalorder %s139, %s141
      %p148 = scmp.eq.s32.totalorder %s26, 3
      %p149 = por %p147, %p148
      %p150 = scmp.ne.s32.totalorder %s141, %s142
      %p151 = scmp.eq.s32.totalorder %s26, 0
      %p152 = por %p150, %p151
      %p153 = scmp.ne.s32.totalorder %s141, %s142
      %p154 = scmp.eq.s32.totalorder %s27, 3
      %p155 = por %p153, %p154
      %p157 = scmp.ne.s32.totalorder %s142, %s156
      %p158 = scmp.eq.s32.totalorder %s27, 0
      %p159 = por %p157, %p158
      %s161 = sadd.s32 %s160, 1
      %p164 = scmp.eq.s32.totalorder %s21, 3
      %p165 = scmp.ne.s32.totalorder %s160, %s162
      %p166 = scmp.eq.s32.totalorder %s21, 0
      %p167 = por %p165, %p166
      %p168 = scmp.ne.s32.totalorder %s160, %s162
      %p169 = scmp.eq.s32.totalorder %s26, 3
      %p170 = por %p168, %p169
      %p171 = scmp.ne.s32.totalorder %s162, %s163
      %p172 = scmp.eq.s32.totalorder %s26, 0
      %p173 = por %p171, %p172
      %p174 = scmp.ne.s32.totalorder %s162, %s163
      %p175 = scmp.eq.s32.totalorder %s27, 3
      %p176 = por %p174, %p175
      %p178 = scmp.ne.s32.totalorder %s163, %s177
      %p179 = scmp.eq.s32.totalorder %s27, 0
      %p180 = por %p178, %p179
      %s181 = ssub.s32 %s21, %s28
      %p182 = scmp.eq.s32.totalorder %s181, 0
      %s184 = sadd.s32 %s183, 1
      %s185 = scalar_select %p182, %s183, %s184
      %p188 = pneg %p182
      %p189 = scmp.eq.s32.totalorder %s21, 3
      %p190 = por %p188, %p189
      %p191 = scmp.ne.s32.totalorder %s183, %s186
      %p192 = scmp.eq.s32.totalorder %s21, 0
      %p193 = por %p191, %p192
      %p194 = scmp.ne.s32.totalorder %s183, %s186
      %p195 = scmp.eq.s32.totalorder %s26, 3
      %p196 = por %p194, %p195
      %p197 = scmp.ne.s32.totalorder %s186, %s187
      %p198 = scmp.eq.s32.totalorder %s26, 0
      %p199 = por %p197, %p198
      %p200 = scmp.ne.s32.totalorder %s186, %s187
      %p201 = scmp.eq.s32.totalorder %s27, 3
      %p202 = por %p200, %p201
      %p204 = scmp.ne.s32.totalorder %s187, %s203
      %p205 = scmp.eq.s32.totalorder %s27, 0
      %p206 = por %p204, %p205
      %p207 = scmp.le.s32.totalorder 1, %s21
      %p208 = scmp.lt.s32.totalorder %s21, 5
      %p209 = pnand %p207, %p208
      %p210 = pneg %p209
      // Predicated region
      $region9: #{tpu_custom_call.1} parent=5 // pred_check
        _
      $region10: #{tpu_custom_call.1} parent=5 // pred_check_branch
        %212 = sbr.rel (%p209) target = $region12
      $region11: #{tpu_custom_call.1} parent=5 // pred_region
        %s213 = ssub.s32 %s21, 1
        // Predicated region
        $region13: #{tpu_custom_call.1} parent=11 // pred_check
          %p214 = pneg %p68
        $region14: #{tpu_custom_call.1} parent=11 // pred_check_branch
          %216 = sbr.rel (%p214) target = $region16
        $region15: #{tpu_custom_call.1} parent=11 // pred_region
          %s218 = ssub.s32 4096, 4096
          %219 = vsyncadd [#allocation6], %s218
          %s220 = sshll.u32 [#allocation5], 4
          %s221 = int_to_ptr.vmem [resolvable:$true] %s220
          %226 = dma.hbm_to_vmem [thread:$0]  %s1, 4096, %s221, [#allocation6], 128, 128, 8
        $region16: #{tpu_custom_call.1} parent=11 // pred_fallthru
          _
        // Predicated region
        $region17: #{tpu_custom_call.1} parent=11 // pred_check
          %p227 = pneg %p89
        $region18: #{tpu_custom_call.1} parent=11 // pred_check_branch
          %229 = sbr.rel (%p227) target = $region20
        $region19: #{tpu_custom_call.1} parent=11 // pred_region
          _
        $region20: #{tpu_custom_call.1} parent=11 // pred_fallthru
          _
        // Predicated region
        $region21: #{tpu_custom_call.1} parent=11 // pred_check
          %p230 = pneg %p110
        $region22: #{tpu_custom_call.1} parent=11 // pred_check_branch
          %232 = sbr.rel (%p230) target = $region24
        $region23: #{tpu_custom_call.1} parent=11 // pred_region
          %s234 = ssub.s32 2048, 2048
          %235 = vsyncadd [#allocation6], %s234
          %s236 = sshll.u32 [#allocation7], 4
          %s237 = int_to_ptr.vmem [resolvable:$true] %s236
          %242 = dma.hbm_to_vmem [thread:$0]  %s3, 2048, %s237, [#allocation6], 128, 128, 8
        $region24: #{tpu_custom_call.1} parent=11 // pred_fallthru
          _
        // Predicated region
        $region25: #{tpu_custom_call.1} parent=11 // pred_check
          %p243 = pneg %p131
        $region26: #{tpu_custom_call.1} parent=11 // pred_check_branch
          %245 = sbr.rel (%p243) target = $region28
        $region27: #{tpu_custom_call.1} parent=11 // pred_region
          _
        $region28: #{tpu_custom_call.1} parent=11 // pred_fallthru
          _
        // Predicated region
        $region29: #{tpu_custom_call.1} parent=11 // pred_check
          %p246 = pneg %p152
        $region30: #{tpu_custom_call.1} parent=11 // pred_check_branch
          %248 = sbr.rel (%p246) target = $region32
        $region31: #{tpu_custom_call.1} parent=11 // pred_region
          %s250 = ssub.s32 4096, 4096
          %251 = vsyncadd [#allocation9], %s250
          %s252 = sshll.u32 [#allocation8], 4
          %s253 = int_to_ptr.vmem [resolvable:$true] %s252
          %258 = dma.hbm_to_vmem [thread:$0]  %s5, 4096, %s253, [#allocation9], 256, 256, 16
        $region32: #{tpu_custom_call.1} parent=11 // pred_fallthru
          _
        // Predicated region
        $region33: #{tpu_custom_call.1} parent=11 // pred_check
          %p259 = pneg %p173
        $region34: #{tpu_custom_call.1} parent=11 // pred_check_branch
          %261 = sbr.rel (%p259) target = $region36
        $region35: #{tpu_custom_call.1} parent=11 // pred_region
          _
        $region36: #{tpu_custom_call.1} parent=11 // pred_fallthru
          _
      $region12: #{tpu_custom_call.1} parent=5 // pred_fallthru
        _
      %p262 = scmp.lt.s32.totalorder %s21, 4
      // Predicated region
      $region37: #{tpu_custom_call.1} parent=5 // pred_check
        %p263 = pneg %p262
      $region38: #{tpu_custom_call.1} parent=5 // pred_check_branch
        %265 = sbr.rel (%p263) target = $region40
      $region39: #{tpu_custom_call.1} parent=5 // pred_region
        // Predicated region
        $region41: #{tpu_custom_call.1} parent=39 // pred_check
          %p266 = pneg %p41
        $region42: #{tpu_custom_call.1} parent=39 // pred_check_branch
          %268 = sbr.rel (%p266) target = $region44
        $region43: #{tpu_custom_call.1} parent=39 // pred_region
          %s269 = sand.u32 %s31, 1
          %s270 = scalar_lea.sflag [#allocation3], %s269
          %s271 = sand.u32 %s31, 1
          %s272 = smul.addr %s271, 128
          %s273 = scalar_lea.vmem [#allocation2], %s272
          %s274 = smul.u32 8, %s21
          %s276 = ssub.s32 2048, 2048
          %277 = vsyncadd %s270, %s276
          %s278 = smul.addr %s274, 2
          %s279 = smul.addr %s278, 128
          %s280 = scalar_lea.hbm %s0, %s279
          %s281 = sshll.u32 %s273, 4
          %s282 = int_to_ptr.vmem [resolvable:$true] %s281
          %287 = dma.hbm_to_vmem [thread:$0]  %s280, 2048, %s282, %s270, 256, 256, 16
        $region44: #{tpu_custom_call.1} parent=39 // pred_fallthru
          _
      $region40: #{tpu_custom_call.1} parent=5 // pred_fallthru
        _
      %p288 = scmp.le.s32.totalorder 1, %s21
      %p289 = scmp.lt.s32.totalorder %s21, 5
      %p290 = pnand %p288, %p289
      %p291 = pneg %p290
      // Predicated region
      $region45: #{tpu_custom_call.1} parent=5 // pred_check
        _
      $region46: #{tpu_custom_call.1} parent=5 // pred_check_branch
        %293 = sbr.rel (%p290) target = $region48
      $region47: #{tpu_custom_call.1} parent=5 // pred_region
        %s294 = ssub.s32 %s21, 1
        %s295 = sand.u32 %s34, 1
        %s296 = scalar_lea.sflag [#allocation3], %s295
        %s297 = sand.u32 %s34, 1
        %s298 = smul.addr %s297, 128
        %s299 = scalar_lea.vmem [#allocation2], %s298
        // Predicated region
        $region49: #{tpu_custom_call.1} parent=47 // pred_check
          %p300 = pneg %p47
        $region50: #{tpu_custom_call.1} parent=47 // pred_check_branch
          %302 = sbr.rel (%p300) target = $region52
        $region51: #{tpu_custom_call.1} parent=47 // pred_region
          %303 = dma.done %s296, 2048
        $region52: #{tpu_custom_call.1} parent=47 // pred_fallthru
          _
        // Predicated region
        $region53: #{tpu_custom_call.1} parent=47 // pred_check
          %p304 = pneg %p68
        $region54: #{tpu_custom_call.1} parent=47 // pred_check_branch
          %306 = sbr.rel (%p304) target = $region56
        $region55: #{tpu_custom_call.1} parent=47 // pred_region
          %307 = dma.done [#allocation6], 4096
        $region56: #{tpu_custom_call.1} parent=47 // pred_fallthru
          _
        // Predicated region
        $region57: #{tpu_custom_call.1} parent=47 // pred_check
          %p308 = pneg %p110
        $region58: #{tpu_custom_call.1} parent=47 // pred_check_branch
          %310 = sbr.rel (%p308) target = $region60
        $region59: #{tpu_custom_call.1} parent=47 // pred_region
          %311 = dma.done [#allocation6], 2048
        $region60: #{tpu_custom_call.1} parent=47 // pred_fallthru
          _
        // Predicated region
        $region61: #{tpu_custom_call.1} parent=47 // pred_check
          %p312 = pneg %p152
        $region62: #{tpu_custom_call.1} parent=47 // pred_check_branch
          %314 = sbr.rel (%p312) target = $region64
        $region63: #{tpu_custom_call.1} parent=47 // pred_region
          %315 = dma.done [#allocation9], 4096
        $region64: #{tpu_custom_call.1} parent=47 // pred_fallthru
          _
        %s316 = sand.u32 %s34, 1
        %s317 = scalar_lea.sflag [#allocation3], %s316
        %s318 = sand.u32 %s34, 1
        %s319 = smul.addr %s318, 128
        %s320 = scalar_lea.vmem [#allocation2], %s319
        %p321 = pneg %p47
        %p322 = pneg %p44
        %p323 = pneg %p68
        %p324 = pneg %p65
        %p325 = pneg %p89
        %p326 = pneg %p86
        %p327 = pneg %p110
        %p328 = pneg %p107
        %p329 = pneg %p131
        %p330 = pneg %p128
        %p331 = pneg %p152
        %p332 = pneg %p149
        %p333 = pneg %p173
        %p334 = pneg %p170
        %p335 = pneg %p199
        %p336 = pneg %p196
        %s337 = sand.u32 %s186, 1
        %s338 = scalar_lea.sflag [#allocation4], %s337
        %s339 = sand.u32 %s186, 1
        %s340 = smul.addr %s339, 128
        %s341 = scalar_lea.vmem [#allocation10], %s340
        %s342 = smul.u32 8, %s26
        %s343 = smul.u32 8, %s26
        %v344 = vld [vmem:[%s299] sm:$0xff]
        %v345 = vld [vmem:[%s299 + $0x8] sm:$0xff]
        %v346 = vld [vmem:[%s299 + $0x10] sm:$0xff]
        %v347 = vld [vmem:[%s299 + $0x18] sm:$0xff]
        %v348 = vld [vmem:[%s299 + $0x20] sm:$0xff]
        %v349 = vld [vmem:[%s299 + $0x28] sm:$0xff]
        %v350 = vld [vmem:[%s299 + $0x30] sm:$0xff]
        %v351 = vld [vmem:[%s299 + $0x38] sm:$0xff]
        %v352 = vld [vmem:[%s299 + $0x40] sm:$0xff]
        %v353 = vld [vmem:[%s299 + $0x48] sm:$0xff]
        %v354 = vld [vmem:[%s299 + $0x50] sm:$0xff]
        %v355 = vld [vmem:[%s299 + $0x58] sm:$0xff]
        %v356 = vld [vmem:[%s299 + $0x60] sm:$0xff]
        %v357 = vld [vmem:[%s299 + $0x68] sm:$0xff]
        %v358 = vld [vmem:[%s299 + $0x70] sm:$0xff]
        %v359 = vld [vmem:[%s299 + $0x78] sm:$0xff]
        %v360 = vld [vmem:[#allocation5] sm:$0xff]
        %v361 = vld [vmem:[#allocation5 + $0x8] sm:$0xff]
        %v362 = vld [vmem:[#allocation5 + $0x10] sm:$0xff]
        %v363 = vld [vmem:[#allocation5 + $0x18] sm:$0xff]
        %v364 = vld [vmem:[#allocation5 + $0x20] sm:$0xff]
        %v365 = vld [vmem:[#allocation5 + $0x28] sm:$0xff]
        %v366 = vld [vmem:[#allocation5 + $0x30] sm:$0xff]
        %v367 = vld [vmem:[#allocation5 + $0x38] sm:$0xff]
        %v368 = vld [vmem:[#allocation5 + $0x40] sm:$0xff]
        %v369 = vld [vmem:[#allocation5 + $0x48] sm:$0xff]
        %v370 = vld [vmem:[#allocation5 + $0x50] sm:$0xff]
        %v371 = vld [vmem:[#allocation5 + $0x58] sm:$0xff]
        %v372 = vld [vmem:[#allocation5 + $0x60] sm:$0xff]
        %v373 = vld [vmem:[#allocation5 + $0x68] sm:$0xff]
        %v374 = vld [vmem:[#allocation5 + $0x70] sm:$0xff]
        %v375 = vld [vmem:[#allocation5 + $0x78] sm:$0xff]
        %v376 = vld [vmem:[#allocation5 + $0x80] sm:$0xff]
        %v377 = vld [vmem:[#allocation5 + $0x88] sm:$0xff]
        %v378 = vld [vmem:[#allocation5 + $0x90] sm:$0xff]
        %v379 = vld [vmem:[#allocation5 + $0x98] sm:$0xff]
        %v380 = vld [vmem:[#allocation5 + $0xa0] sm:$0xff]
        %v381 = vld [vmem:[#allocation5 + $0xa8] sm:$0xff]
        %v382 = vld [vmem:[#allocation5 + $0xb0] sm:$0xff]
        %v383 = vld [vmem:[#allocation5 + $0xb8] sm:$0xff]
        %v384 = vld [vmem:[#allocation5 + $0xc0] sm:$0xff]
        %v385 = vld [vmem:[#allocation5 + $0xc8] sm:$0xff]
        %v386 = vld [vmem:[#allocation5 + $0xd0] sm:$0xff]
        %v387 = vld [vmem:[#allocation5 + $0xd8] sm:$0xff]
        %v388 = vld [vmem:[#allocation5 + $0xe0] sm:$0xff]
        %v389 = vld [vmem:[#allocation5 + $0xe8] sm:$0xff]
        %v390 = vld [vmem:[#allocation5 + $0xf0] sm:$0xff]
        %v391 = vld [vmem:[#allocation5 + $0xf8] sm:$0xff]
        %v392 = vld [vmem:[%s2] sm:$0x1]
        %v394 = vlaneseq
        %v395 = vshrl.u32 %v394, 7
        %v396 = vsub.s32 0, %v395
        %v397 = vrot.slane %v392, %v396
        %399 = vmatprep.subr.mxu0 0.0
        %400 = vmatpush1.msra.mxu0 %v360
        %401 = vmatprep.subr.mxu0 0.0
        %402 = vmatpush1.msra.mxu0 %v361
        %403 = vmatprep.subr.mxu0 0.0
        %404 = vmatpush1.msra.mxu0 %v362
        %405 = vmatprep.subr.mxu0 0.0
        %406 = vmatpush1.msra.mxu0 %v363
        %407 = vmatprep.subr.mxu0 0.0
        %408 = vmatpush1.msra.mxu0 %v364
        %409 = vmatprep.subr.mxu0 0.0
        %410 = vmatpush1.msra.mxu0 %v365
        %411 = vmatprep.subr.mxu0 0.0
        %412 = vmatpush1.msra.mxu0 %v366
        %413 = vmatprep.subr.mxu0 0.0
        %414 = vmatpush1.msra.mxu0 %v367
        %415 = vmatprep.subr.mxu0 0.0
        %416 = vmatpush1.msra.mxu0 %v368
        %417 = vmatprep.subr.mxu0 0.0
        %418 = vmatpush1.msra.mxu0 %v369
        %419 = vmatprep.subr.mxu0 0.0
        %420 = vmatpush1.msra.mxu0 %v370
        %421 = vmatprep.subr.mxu0 0.0
        %422 = vmatpush1.msra.mxu0 %v371
        %423 = vmatprep.subr.mxu0 0.0
        %424 = vmatpush1.msra.mxu0 %v372
        %425 = vmatprep.subr.mxu0 0.0
        %426 = vmatpush1.msra.mxu0 %v373
        %427 = vmatprep.subr.mxu0 0.0
        %428 = vmatpush1.msra.mxu0 %v374
        %429 = vmatprep.subr.mxu0 0.0
        %430 = vmatpush1.msra.mxu0 %v375
        %431 = vmatprep.subr.mxu0 0.0
        %432 = vmatpush1.msra.mxu0 %v376
        %433 = vmatprep.subr.mxu0 0.0
        %434 = vmatpush1.msra.mxu0 %v377
        %435 = vmatprep.subr.mxu0 0.0
        %436 = vmatpush1.msra.mxu0 %v378
        %437 = vmatprep.subr.mxu0 0.0
        %438 = vmatpush1.msra.mxu0 %v379
        %439 = vmatprep.subr.mxu0 0.0
        %440 = vmatpush1.msra.mxu0 %v380
        %441 = vmatprep.subr.mxu0 0.0
        %442 = vmatpush1.msra.mxu0 %v381
        %443 = vmatprep.subr.mxu0 0.0
        %444 = vmatpush1.msra.mxu0 %v382
        %445 = vmatprep.subr.mxu0 0.0
        %446 = vmatpush1.msra.mxu0 %v383
        %447 = vmatprep.subr.mxu0 0.0
        %448 = vmatpush1.msra.mxu0 %v384
        %449 = vmatprep.subr.mxu0 0.0
        %450 = vmatpush1.msra.mxu0 %v385
        %451 = vmatprep.subr.mxu0 0.0
        %452 = vmatpush1.msra.mxu0 %v386
        %453 = vmatprep.subr.mxu0 0.0
        %454 = vmatpush1.msra.mxu0 %v387
        %455 = vmatprep.subr.mxu0 0.0
        %456 = vmatpush1.msra.mxu0 %v388
        %457 = vmatprep.subr.mxu0 0.0
        %458 = vmatpush1.msra.mxu0 %v389
        %459 = vmatprep.subr.mxu0 0.0
        %460 = vmatpush1.msra.mxu0 %v390
        %461 = vmatprep.subr.mxu0 0.0
        %462 = vmatpush1.msra.mxu0 %v391
        %463 = vmatprep.mubr.f32.mxu0 %v345
        %464 = vmatmul.mubr.f32.gmra.mrb[0].mxu0 %v344
        %v465 = vpop.f32.mrb[0].mxu0
        %v466 = vadd.f32 %v397, %v465
        %v467 = vpop.f32.mrb[0].mxu0
        %468 = vmatprep.mubr.f32.mxu0 %v347
        %469 = vmatmul.mubr.f32.gmra.mrb[0].mxu0 %v346
        %v470 = vpop.f32.mrb[0].mxu0
        %v471 = vadd.f32 %v397, %v470
        %v472 = vpop.f32.mrb[0].mxu0
        %473 = vmatprep.mubr.f32.mxu0 %v349
        %474 = vmatmul.mubr.f32.gmra.mrb[0].mxu0 %v348
        %v475 = vpop.f32.mrb[0].mxu0
        %v476 = vadd.f32 %v397, %v475
        %v477 = vpop.f32.mrb[0].mxu0
        %478 = vmatprep.mubr.f32.mxu0 %v351
        %479 = vmatmul.mubr.f32.gmra.mrb[0].mxu0 %v350
        %v480 = vpop.f32.mrb[0].mxu0
        %v481 = vadd.f32 %v397, %v480
        %v482 = vpop.f32.mrb[0].mxu0
        %483 = vmatprep.mubr.f32.mxu0 %v353
        %484 = vmatmul.mubr.f32.gmra.mrb[0].mxu0 %v352
        %v485 = vpop.f32.mrb[0].mxu0
        %v486 = vadd.f32 %v397, %v485
        %v487 = vpop.f32.mrb[0].mxu0
        %488 = vmatprep.mubr.f32.mxu0 %v355
        %489 = vmatmul.mubr.f32.gmra.mrb[0].mxu0 %v354
        %v490 = vpop.f32.mrb[0].mxu0
        %v491 = vadd.f32 %v397, %v490
        %v492 = vpop.f32.mrb[0].mxu0
        %493 = vmatprep.mubr.f32.mxu0 %v357
        %494 = vmatmul.mubr.f32.gmra.mrb[0].mxu0 %v356
        %v495 = vpop.f32.mrb[0].mxu0
        %v496 = vadd.f32 %v397, %v495
        %v497 = vpop.f32.mrb[0].mxu0
        %498 = vmatprep.mubr.f32.mxu0 %v359
        %499 = vmatmul.mubr.f32.gmra.mrb[0].mxu0 %v358
        %v500 = vpop.f32.mrb[0].mxu0
        %v501 = vadd.f32 %v397, %v500
        %v502 = vpop.f32.mrb[0].mxu0
        %503 = vdwg.mxu0
        %v504 = vmax.f32 %v466, 0.0
        %v505 = vmax.f32 %v471, 0.0
        %v506 = vmax.f32 %v476, 0.0
        %v507 = vmax.f32 %v481, 0.0
        %v508 = vmax.f32 %v486, 0.0
        %v509 = vmax.f32 %v491, 0.0
        %v510 = vmax.f32 %v496, 0.0
        %v511 = vmax.f32 %v501, 0.0
        %v512 = vld [vmem:[#allocation7] sm:$0xff]
        %v513 = vld [vmem:[#allocation7 + $0x8] sm:$0xff]
        %v514 = vld [vmem:[#allocation7 + $0x10] sm:$0xff]
        %v515 = vld [vmem:[#allocation7 + $0x18] sm:$0xff]
        %v516 = vld [vmem:[#allocation7 + $0x20] sm:$0xff]
        %v517 = vld [vmem:[#allocation7 + $0x28] sm:$0xff]
        %v518 = vld [vmem:[#allocation7 + $0x30] sm:$0xff]
        %v519 = vld [vmem:[#allocation7 + $0x38] sm:$0xff]
        %v520 = vld [vmem:[#allocation7 + $0x40] sm:$0xff]
        %v521 = vld [vmem:[#allocation7 + $0x48] sm:$0xff]
        %v522 = vld [vmem:[#allocation7 + $0x50] sm:$0xff]
        %v523 = vld [vmem:[#allocation7 + $0x58] sm:$0xff]
        %v524 = vld [vmem:[#allocation7 + $0x60] sm:$0xff]
        %v525 = vld [vmem:[#allocation7 + $0x68] sm:$0xff]
        %v526 = vld [vmem:[#allocation7 + $0x70] sm:$0xff]
        %v527 = vld [vmem:[#allocation7 + $0x78] sm:$0xff]
        %v528 = vld [vmem:[%s4] sm:$0x1]
        %v530 = vlaneseq
        %v531 = vshrl.u32 %v530, 7
        %v532 = vsub.s32 0, %v531
        %v533 = vrot.slane %v528, %v532
        %535 = vmatprep.subr.mxu0 0.0
        %536 = vmatpush1.msra.mxu0 %v512
        %537 = vmatprep.subr.mxu0 0.0
        %538 = vmatpush1.msra.mxu0 %v513
        %539 = vmatprep.subr.mxu0 0.0
        %540 = vmatpush1.msra.mxu0 %v514
        %541 = vmatprep.subr.mxu0 0.0
        %542 = vmatpush1.msra.mxu0 %v515
        %543 = vmatprep.subr.mxu0 0.0
        %544 = vmatpush1.msra.mxu0 %v516
        %545 = vmatprep.subr.mxu0 0.0
        %546 = vmatpush1.msra.mxu0 %v517
        %547 = vmatprep.subr.mxu0 0.0
        %548 = vmatpush1.msra.mxu0 %v518
        %549 = vmatprep.subr.mxu0 0.0
        %550 = vmatpush1.msra.mxu0 %v519
        %551 = vmatprep.subr.mxu0 0.0
        %552 = vmatpush1.msra.mxu0 %v520
        %553 = vmatprep.subr.mxu0 0.0
        %554 = vmatpush1.msra.mxu0 %v521
        %555 = vmatprep.subr.mxu0 0.0
        %556 = vmatpush1.msra.mxu0 %v522
        %557 = vmatprep.subr.mxu0 0.0
        %558 = vmatpush1.msra.mxu0 %v523
        %559 = vmatprep.subr.mxu0 0.0
        %560 = vmatpush1.msra.mxu0 %v524
        %561 = vmatprep.subr.mxu0 0.0
        %562 = vmatpush1.msra.mxu0 %v525
        %563 = vmatprep.subr.mxu0 0.0
        %564 = vmatpush1.msra.mxu0 %v526
        %565 = vmatprep.subr.mxu0 0.0
        %566 = vmatpush1.msra.mxu0 %v527
        %567 = vmatprep.subr.mxu0 0.0
        %568 = vmatpush1.msra.mxu0 0.0
        %569 = vmatprep.subr.mxu0 0.0
        %570 = vmatpush1.msra.mxu0 0.0
        %571 = vmatprep.subr.mxu0 0.0
        %572 = vmatpush1.msra.mxu0 0.0
        %573 = vmatprep.subr.mxu0 0.0
        %574 = vmatpush1.msra.mxu0 0.0
        %575 = vmatprep.subr.mxu0 0.0
        %576 = vmatpush1.msra.mxu0 0.0
        %577 = vmatprep.subr.mxu0 0.0
        %578 = vmatpush1.msra.mxu0 0.0
        %579 = vmatprep.subr.mxu0 0.0
        %580 = vmatpush1.msra.mxu0 0.0
        %581 = vmatprep.subr.mxu0 0.0
        %582 = vmatpush1.msra.mxu0 0.0
        %583 = vmatprep.subr.mxu0 0.0
        %584 = vmatpush1.msra.mxu0 0.0
        %585 = vmatprep.subr.mxu0 0.0
        %586 = vmatpush1.msra.mxu0 0.0
        %587 = vmatprep.subr.mxu0 0.0
        %588 = vmatpush1.msra.mxu0 0.0
        %589 = vmatprep.subr.mxu0 0.0
        %590 = vmatpush1.msra.mxu0 0.0
        %591 = vmatprep.subr.mxu0 0.0
        %592 = vmatpush1.msra.mxu0 0.0
        %593 = vmatprep.subr.mxu0 0.0
        %594 = vmatpush1.msra.mxu0 0.0
        %595 = vmatprep.subr.mxu0 0.0
        %596 = vmatpush1.msra.mxu0 0.0
        %597 = vmatprep.subr.mxu0 0.0
        %598 = vmatpush1.msra.mxu0 0.0
        %599 = vmatprep.mubr.f32.mxu0 0.0
        %600 = vmatmul.mubr.f32.gmra.mrb[0].mxu0 %v504
        %v601 = vpop.f32.mrb[0].mxu0
        %v602 = vadd.f32 %v533, %v601
        %v603 = vpop.f32.mrb[0].mxu0
        %604 = vmatprep.mubr.f32.mxu0 0.0
        %605 = vmatmul.mubr.f32.gmra.mrb[0].mxu0 %v505
        %v606 = vpop.f32.mrb[0].mxu0
        %v607 = vadd.f32 %v533, %v606
        %v608 = vpop.f32.mrb[0].mxu0
        %609 = vmatprep.mubr.f32.mxu0 0.0
        %610 = vmatmul.mubr.f32.gmra.mrb[0].mxu0 %v506
        %v611 = vpop.f32.mrb[0].mxu0
        %v612 = vadd.f32 %v533, %v611
        %v613 = vpop.f32.mrb[0].mxu0
        %614 = vmatprep.mubr.f32.mxu0 0.0
        %615 = vmatmul.mubr.f32.gmra.mrb[0].mxu0 %v507
        %v616 = vpop.f32.mrb[0].mxu0
        %v617 = vadd.f32 %v533, %v616
        %v618 = vpop.f32.mrb[0].mxu0
        %619 = vmatprep.mubr.f32.mxu0 0.0
        %620 = vmatmul.mubr.f32.gmra.mrb[0].mxu0 %v508
        %v621 = vpop.f32.mrb[0].mxu0
        %v622 = vadd.f32 %v533, %v621
        %v623 = vpop.f32.mrb[0].mxu0
        %624 = vmatprep.mubr.f32.mxu0 0.0
        %625 = vmatmul.mubr.f32.gmra.mrb[0].mxu0 %v509
        %v626 = vpop.f32.mrb[0].mxu0
        %v627 = vadd.f32 %v533, %v626
        %v628 = vpop.f32.mrb[0].mxu0
        %629 = vmatprep.mubr.f32.mxu0 0.0
        %630 = vmatmul.mubr.f32.gmra.mrb[0].mxu0 %v510
        %v631 = vpop.f32.mrb[0].mxu0
        %v632 = vadd.f32 %v533, %v631
        %v633 = vpop.f32.mrb[0].mxu0
        %634 = vmatprep.mubr.f32.mxu0 0.0
        %635 = vmatmul.mubr.f32.gmra.mrb[0].mxu0 %v511
        %v636 = vpop.f32.mrb[0].mxu0
        %v637 = vadd.f32 %v533, %v636
        %v638 = vpop.f32.mrb[0].mxu0
        %639 = vdwg.mxu0
        %v640 = vmax.f32 %v602, 0.0
        %v641 = vmax.f32 %v607, 0.0
        %v642 = vmax.f32 %v612, 0.0
        %v643 = vmax.f32 %v617, 0.0
        %v644 = vmax.f32 %v622, 0.0
        %v645 = vmax.f32 %v627, 0.0
        %v646 = vmax.f32 %v632, 0.0
        %v647 = vmax.f32 %v637, 0.0
        %v648 = vld [vmem:[#allocation8] sm:$0xff]
        %v649 = vld [vmem:[#allocation8 + $0x8] sm:$0xff]
        %v650 = vld [vmem:[#allocation8 + $0x10] sm:$0xff]
        %v651 = vld [vmem:[#allocation8 + $0x18] sm:$0xff]
        %v652 = vld [vmem:[#allocation8 + $0x20] sm:$0xff]
        %v653 = vld [vmem:[#allocation8 + $0x28] sm:$0xff]
        %v654 = vld [vmem:[#allocation8 + $0x30] sm:$0xff]
        %v655 = vld [vmem:[#allocation8 + $0x38] sm:$0xff]
        %v656 = vld [vmem:[#allocation8 + $0x40] sm:$0xff]
        %v657 = vld [vmem:[#allocation8 + $0x48] sm:$0xff]
        %v658 = vld [vmem:[#allocation8 + $0x50] sm:$0xff]
        %v659 = vld [vmem:[#allocation8 + $0x58] sm:$0xff]
        %v660 = vld [vmem:[#allocation8 + $0x60] sm:$0xff]
        %v661 = vld [vmem:[#allocation8 + $0x68] sm:$0xff]
        %v662 = vld [vmem:[#allocation8 + $0x70] sm:$0xff]
        %v663 = vld [vmem:[#allocation8 + $0x78] sm:$0xff]
        %v664 = vld [vmem:[#allocation8 + $0x80] sm:$0xff]
        %v665 = vld [vmem:[#allocation8 + $0x88] sm:$0xff]
        %v666 = vld [vmem:[#allocation8 + $0x90] sm:$0xff]
        %v667 = vld [vmem:[#allocation8 + $0x98] sm:$0xff]
        %v668 = vld [vmem:[#allocation8 + $0xa0] sm:$0xff]
        %v669 = vld [vmem:[#allocation8 + $0xa8] sm:$0xff]
        %v670 = vld [vmem:[#allocation8 + $0xb0] sm:$0xff]
        %v671 = vld [vmem:[#allocation8 + $0xb8] sm:$0xff]
        %v672 = vld [vmem:[#allocation8 + $0xc0] sm:$0xff]
        %v673 = vld [vmem:[#allocation8 + $0xc8] sm:$0xff]
        %v674 = vld [vmem:[#allocation8 + $0xd0] sm:$0xff]
        %v675 = vld [vmem:[#allocation8 + $0xd8] sm:$0xff]
        %v676 = vld [vmem:[#allocation8 + $0xe0] sm:$0xff]
        %v677 = vld [vmem:[#allocation8 + $0xe8] sm:$0xff]
        %v678 = vld [vmem:[#allocation8 + $0xf0] sm:$0xff]
        %v679 = vld [vmem:[#allocation8 + $0xf8] sm:$0xff]
        %v680 = vld [vmem:[%s6] sm:$0x3]
        %v682 = vlaneseq
        %v683 = vshrl.u32 %v682, 7
        %v684 = vsub.s32 0, %v683
        %v685 = vrot.slane %v680, %v684
        %v686 = vlaneseq
        %v687 = vshrl.u32 %v686, 7
        %v688 = vsub.s32 1, %v687
        %v689 = vrot.slane %v680, %v688
        %692 = vmatprep.subr.mxu0 %v649
        %693 = vmatpush1.msra.mxu0 %v648
        %694 = vmatprep.subr.mxu0 %v651
        %695 = vmatpush1.msra.mxu0 %v650
        %696 = vmatprep.subr.mxu0 %v653
        %697 = vmatpush1.msra.mxu0 %v652
        %698 = vmatprep.subr.mxu0 %v655
        %699 = vmatpush1.msra.mxu0 %v654
        %700 = vmatprep.subr.mxu0 %v657
        %701 = vmatpush1.msra.mxu0 %v656
        %702 = vmatprep.subr.mxu0 %v659
        %703 = vmatpush1.msra.mxu0 %v658
        %704 = vmatprep.subr.mxu0 %v661
        %705 = vmatpush1.msra.mxu0 %v660
        %706 = vmatprep.subr.mxu0 %v663
        %707 = vmatpush1.msra.mxu0 %v662
        %708 = vmatprep.subr.mxu0 %v665
        %709 = vmatpush1.msra.mxu0 %v664
        %710 = vmatprep.subr.mxu0 %v667
        %711 = vmatpush1.msra.mxu0 %v666
        %712 = vmatprep.subr.mxu0 %v669
        %713 = vmatpush1.msra.mxu0 %v668
        %714 = vmatprep.subr.mxu0 %v671
        %715 = vmatpush1.msra.mxu0 %v670
        %716 = vmatprep.subr.mxu0 %v673
        %717 = vmatpush1.msra.mxu0 %v672
        %718 = vmatprep.subr.mxu0 %v675
        %719 = vmatpush1.msra.mxu0 %v674
        %720 = vmatprep.subr.mxu0 %v677
        %721 = vmatpush1.msra.mxu0 %v676
        %722 = vmatprep.subr.mxu0 %v679
        %723 = vmatpush1.msra.mxu0 %v678
        %724 = vmatprep.subr.mxu0 0.0
        %725 = vmatpush1.msra.mxu0 0.0
        %726 = vmatprep.subr.mxu0 0.0
        %727 = vmatpush1.msra.mxu0 0.0
        %728 = vmatprep.subr.mxu0 0.0
        %729 = vmatpush1.msra.mxu0 0.0
        %730 = vmatprep.subr.mxu0 0.0
        %731 = vmatpush1.msra.mxu0 0.0
        %732 = vmatprep.subr.mxu0 0.0
        %733 = vmatpush1.msra.mxu0 0.0
        %734 = vmatprep.subr.mxu0 0.0
        %735 = vmatpush1.msra.mxu0 0.0
        %736 = vmatprep.subr.mxu0 0.0
        %737 = vmatpush1.msra.mxu0 0.0
        %738 = vmatprep.subr.mxu0 0.0
        %739 = vmatpush1.msra.mxu0 0.0
        %740 = vmatprep.subr.mxu0 0.0
        %741 = vmatpush1.msra.mxu0 0.0
        %742 = vmatprep.subr.mxu0 0.0
        %743 = vmatpush1.msra.mxu0 0.0
        %744 = vmatprep.subr.mxu0 0.0
        %745 = vmatpush1.msra.mxu0 0.0
        %746 = vmatprep.subr.mxu0 0.0
        %747 = vmatpush1.msra.mxu0 0.0
        %748 = vmatprep.subr.mxu0 0.0
        %749 = vmatpush1.msra.mxu0 0.0
        %750 = vmatprep.subr.mxu0 0.0
        %751 = vmatpush1.msra.mxu0 0.0
        %752 = vmatprep.subr.mxu0 0.0
        %753 = vmatpush1.msra.mxu0 0.0
        %754 = vmatprep.subr.mxu0 0.0
        %755 = vmatpush1.msra.mxu0 0.0
        %756 = vmatprep.mubr.f32.mxu0 0.0
        %757 = vmatmul.mubr.f32.gmra.mrb[0].mxu0 %v640
        %v758 = vpop.f32.mrb[0].mxu0
        %v759 = vadd.f32 %v685, %v758
        %v760 = vpop.f32.mrb[0].mxu0
        %v761 = vadd.f32 %v689, %v760
        %762 = vmatprep.mubr.f32.mxu0 0.0
        %763 = vmatmul.mubr.f32.gmra.mrb[0].mxu0 %v641
        %v764 = vpop.f32.mrb[0].mxu0
        %v765 = vadd.f32 %v685, %v764
        %v766 = vpop.f32.mrb[0].mxu0
        %v767 = vadd.f32 %v689, %v766
        %768 = vmatprep.mubr.f32.mxu0 0.0
        %769 = vmatmul.mubr.f32.gmra.mrb[0].mxu0 %v642
        %v770 = vpop.f32.mrb[0].mxu0
        %v771 = vadd.f32 %v685, %v770
        %v772 = vpop.f32.mrb[0].mxu0
        %v773 = vadd.f32 %v689, %v772
        %774 = vmatprep.mubr.f32.mxu0 0.0
        %775 = vmatmul.mubr.f32.gmra.mrb[0].mxu0 %v643
        %v776 = vpop.f32.mrb[0].mxu0
        %v777 = vadd.f32 %v685, %v776
        %v778 = vpop.f32.mrb[0].mxu0
        %v779 = vadd.f32 %v689, %v778
        %780 = vmatprep.mubr.f32.mxu0 0.0
        %781 = vmatmul.mubr.f32.gmra.mrb[0].mxu0 %v644
        %v782 = vpop.f32.mrb[0].mxu0
        %v783 = vadd.f32 %v685, %v782
        %v784 = vpop.f32.mrb[0].mxu0
        %v785 = vadd.f32 %v689, %v784
        %786 = vmatprep.mubr.f32.mxu0 0.0
        %787 = vmatmul.mubr.f32.gmra.mrb[0].mxu0 %v645
        %v788 = vpop.f32.mrb[0].mxu0
        %v789 = vadd.f32 %v685, %v788
        %v790 = vpop.f32.mrb[0].mxu0
        %v791 = vadd.f32 %v689, %v790
        %792 = vmatprep.mubr.f32.mxu0 0.0
        %793 = vmatmul.mubr.f32.gmra.mrb[0].mxu0 %v646
        %v794 = vpop.f32.mrb[0].mxu0
        %v795 = vadd.f32 %v685, %v794
        %v796 = vpop.f32.mrb[0].mxu0
        %v797 = vadd.f32 %v689, %v796
        %798 = vmatprep.mubr.f32.mxu0 0.0
        %799 = vmatmul.mubr.f32.gmra.mrb[0].mxu0 %v647
        %v800 = vpop.f32.mrb[0].mxu0
        %v801 = vadd.f32 %v685, %v800
        %v802 = vpop.f32.mrb[0].mxu0
        %v803 = vadd.f32 %v689, %v802
        %804 = vdwg.mxu0
        %805 = vst [vmem:[%s341] sm:$0xff] %v759
        %806 = vst [vmem:[%s341 + $0x8] sm:$0xff] %v761
        %807 = vst [vmem:[%s341 + $0x10] sm:$0xff] %v765
        %808 = vst [vmem:[%s341 + $0x18] sm:$0xff] %v767
        %809 = vst [vmem:[%s341 + $0x20] sm:$0xff] %v771
        %810 = vst [vmem:[%s341 + $0x28] sm:$0xff] %v773
        %811 = vst [vmem:[%s341 + $0x30] sm:$0xff] %v777
        %812 = vst [vmem:[%s341 + $0x38] sm:$0xff] %v779
        %813 = vst [vmem:[%s341 + $0x40] sm:$0xff] %v783
        %814 = vst [vmem:[%s341 + $0x48] sm:$0xff] %v785
        %815 = vst [vmem:[%s341 + $0x50] sm:$0xff] %v789
        %816 = vst [vmem:[%s341 + $0x58] sm:$0xff] %v791
        %817 = vst [vmem:[%s341 + $0x60] sm:$0xff] %v795
        %818 = vst [vmem:[%s341 + $0x68] sm:$0xff] %v797
        %819 = vst [vmem:[%s341 + $0x70] sm:$0xff] %v801
        %820 = vst [vmem:[%s341 + $0x78] sm:$0xff] %v803
        %s821 = sand.u32 %s186, 1
        %s822 = scalar_lea.sflag [#allocation4], %s821
        %s823 = sand.u32 %s186, 1
        %s824 = smul.addr %s823, 128
        %s825 = scalar_lea.vmem [#allocation10], %s824
        // Predicated region
        $region65: #{tpu_custom_call.1} parent=47 // pred_check
          %p826 = pneg %p196
        $region66: #{tpu_custom_call.1} parent=47 // pred_check_branch
          %828 = sbr.rel (%p826) target = $region68
        $region67: #{tpu_custom_call.1} parent=47 // pred_region
          %s829 = smul.u32 8, %s26
          %s831 = ssub.s32 2048, 2048
          %832 = vsyncadd %s822, %s831
          %s833 = smul.addr %s829, 2
          %s834 = smul.addr %s833, 128
          %s835 = scalar_lea.hbm %s7, %s834
          %s836 = sshll.u32 %s825, 4
          %s837 = int_to_ptr.vmem [resolvable:$true] %s836
          %842 = dma.vmem_to_hbm [thread:$0]  %s837, 2048, %s835, %s822, 256, 256, 16
        $region68: #{tpu_custom_call.1} parent=47 // pred_fallthru
          _
      $region48: #{tpu_custom_call.1} parent=5 // pred_fallthru
        _
      %p843 = scmp.le.s32.totalorder 2, %s21
      // Predicated region
      $region69: #{tpu_custom_call.1} parent=5 // pred_check
        %p844 = pneg %p843
      $region70: #{tpu_custom_call.1} parent=5 // pred_check_branch
        %846 = sbr.rel (%p844) target = $region72
      $region71: #{tpu_custom_call.1} parent=5 // pred_region
        %s847 = ssub.s32 %s21, 2
        // Predicated region
        $region73: #{tpu_custom_call.1} parent=71 // pred_check
          %p848 = pneg %p202
        $region74: #{tpu_custom_call.1} parent=71 // pred_check_branch
          %850 = sbr.rel (%p848) target = $region76
        $region75: #{tpu_custom_call.1} parent=71 // pred_region
          %s851 = sand.u32 %s187, 1
          %s852 = scalar_lea.sflag [#allocation4], %s851
          %s853 = sand.u32 %s187, 1
          %s854 = smul.addr %s853, 128
          %s855 = scalar_lea.vmem [#allocation10], %s854
          %856 = dma.done %s852, 2048
        $region76: #{tpu_custom_call.1} parent=71 // pred_fallthru
          _
      $region72: #{tpu_custom_call.1} parent=5 // pred_fallthru
        _
    $region6: #{tpu_custom_call.1} parent=1 // loop_footer
      %s25 = sadd.s32 1, %s21
    $region7: #{tpu_custom_call.1} parent=1 // loop_footer_branch
      %20 = sbr.rel target = $region3
    $region8: #{tpu_custom_call.1} parent=1 // loop_exit
      _
    %857 = vsyncpa [#allocation3], 1
    %s858 = scalar_lea.sflag [#allocation3], 1
    %859 = vsyncpa %s858, 1
    %860 = vsyncpa [#allocation6], 1
    %861 = vsyncpa [#allocation9], 1
    %862 = vsyncpa [#allocation4], 1
    %s863 = scalar_lea.sflag [#allocation4], 1
    %864 = vsyncpa %s863, 1

</llo_original>
